<compile_context>
chip_gen: v7x
topology: tpu7x:2x2x1
jax: 0.10.0
libtpu: 0.0.40
codegen_flags: <defaults>
</compile_context>

<pallas_src>
import jax
import jax.numpy as jnp
from jax.experimental import pallas as pl
from jax.experimental.pallas import tpu as pltpu


def _hippo_seq_kernel(x_ref, h0_ref, c0_ref, wix_ref, wih_ref, aux_ref,
                      abar_ref, bvec_ref, h_out_ref, c_out_ref):
    t = pl.program_id(1)

    # Seed the resident carries at the first step of this batch tile.  The output
    # blocks double as the carry (their block index is constant over t, so they
    # stay in VMEM and are flushed to HBM once per batch tile).
    @pl.when(t == 0)
    def _():
        h_out_ref[...] = h0_ref[...]
        c_out_ref[...] = c0_ref[...]

    h_prev = h_out_ref[...]                        # [TB, H] f32
    c_prev = c_out_ref[...]                        # [TB, H] f32

    # --- tau = GruCell(concat(x, h_prev), carry-reset-to-zero) --------------
    # input2hidden(concat(x, h)) == x @ Wx + h @ Wh : two direct MXU passes,
    # no staging scratch needed.  bf16 operands, f32 accumulation.
    gi = (jnp.dot(x_ref[...], wix_ref[...], preferred_element_type=jnp.float32)
          + jnp.dot(h_prev.astype(jnp.bfloat16), wih_ref[...],
                    preferred_element_type=jnp.float32))       # [TB, H]

    bi = aux_ref[0:1, :]       # input2hidden bias
    bh = aux_ref[1:2, :]       # hidden2hidden bias (acts on a zeroed hidden state)
    wm = aux_ref[2:3, :]       # mlp weight row (Linear(H, 1))
    bib = aux_ref[3:4, :]      # bi + bh (pre-folded)

    # reset_gate and update_gate are the same expression in the reference module:
    # compute the sigmoid once (one EUP op instead of two).
    gate = jax.nn.sigmoid(gi + bib)
    new = jnp.tanh(gi + bi + gate * bh)
    h_t = (1.0 - gate) * new                        # update*0 + (1-update)*new

    # --- f_t = mlp(h_t): Linear(H, 1); bias bm folded into bvec row 1 --------
    f_raw = jnp.sum(h_t * wm, axis=-1, keepdims=True)          # [TB, 1]

    # --- c_t = Abar_t @ c_{t-1} + Bbar_t * f_t  (GBT-discretized LegS) -------
    c_t = (jnp.dot(c_prev.astype(jnp.bfloat16), abar_ref[...],
                   preferred_element_type=jnp.float32)
           + f_raw * bvec_ref[0:1, :] + bvec_ref[1:2, :])       # [TB, H]

    h_out_ref[...] = h_t
    c_out_ref[...] = c_t


def hippo_cell_seq(xs, h0, c0, params, *, batch_tile=16):
    """Run T HippoCell steps; returns (h_T, c_T)."""
    T, B, D = xs.shape
    H = h0.shape[1]
    assert params["abar"].shape[0] == T, "Abar/Bbar stacks must cover the sequence"
    TB = min(batch_tile, B)
    assert B % TB == 0
    nb = B // TB

    xs_bf = xs.astype(jnp.bfloat16)   # halve the xs HBM stream; matmul is bf16 anyway

    in_specs = [
        pl.BlockSpec((None, TB, D), lambda b, t: (t, b, 0)),   # xs      (streamed)
        pl.BlockSpec((TB, H), lambda b, t: (b, 0)),            # h0      (per tile)
        pl.BlockSpec((TB, H), lambda b, t: (b, 0)),            # c0      (per tile)
        pl.BlockSpec((D, H), lambda b, t: (0, 0)),             # Wx      (resident)
        pl.BlockSpec((H, H), lambda b, t: (0, 0)),             # Wh      (resident)
        pl.BlockSpec((8, H), lambda b, t: (0, 0)),             # aux     (resident)
        pl.BlockSpec((None, H, H), lambda b, t: (t, 0, 0)),    # Abar_t  (streamed)
        pl.BlockSpec((None, 2, H), lambda b, t: (t, 0, 0)),    # Bbar_t  (streamed)
    ]
    out_specs = (
        pl.BlockSpec((TB, H), lambda b, t: (b, 0)),            # h carry / output
        pl.BlockSpec((TB, H), lambda b, t: (b, 0)),            # c carry / output
    )

    return pl.pallas_call(
        _hippo_seq_kernel,
        out_shape=(jax.ShapeDtypeStruct((B, H), jnp.float32),
                   jax.ShapeDtypeStruct((B, H), jnp.float32)),
        grid=(nb, T),
        in_specs=in_specs,
        out_specs=out_specs,
        compiler_params=pltpu.CompilerParams(
            dimension_semantics=("parallel", "arbitrary"),
            vmem_limit_bytes=32 * 1024 * 1024),
    )(xs_bf, h0, c0, params["wix"], params["wih"], params["aux"],
      params["abar"], params["bvec"])


def make_params(key, input_size, hidden_size, seq_len, gbt_alpha=0.5):
    D, H, T = input_size, hidden_size, seq_len
    ks = jax.random.split(key, 6)
    std = 0.02

    # GruCell.input2hidden: Linear(D+H, H), split as [D,H] and [H,H] (bf16, MXU).
    wi_x = jax.random.normal(ks[0], (D, H), jnp.float32) * std
    wi_h = jax.random.normal(ks[1], (H, H), jnp.float32) * std

    bi = jax.random.normal(ks[2], (H,), jnp.float32) * std
    bh = jax.random.normal(ks[3], (H,), jnp.float32) * std     # hidden2hidden bias
    wm = jax.random.normal(ks[4], (H,), jnp.float32) * std     # mlp Linear(H, 1) weight
    bm = jax.random.normal(ks[5], (), jnp.float32) * std       # mlp bias

    # Pack small per-feature vectors into one sublane-aligned [8, H] block.
    aux = jnp.zeros((8, H), jnp.float32)
    aux = aux.at[0].set(bi).at[1].set(bh).at[2].set(wm).at[3].set(bi + bh)

    # HiPPO-LegS A, B and GBT(alpha) discretization per time index t = 1..T.
    n = jnp.arange(H, dtype=jnp.float32)
    rt = jnp.sqrt(2.0 * n + 1.0)
    A = jnp.where(n[:, None] > n[None, :], rt[:, None] * rt[None, :], 0.0)
    A = A + jnp.diag(n + 1.0)
    Bvec = rt
    I = jnp.eye(H, dtype=jnp.float32)

    abar_list, bvec_list = [], []
    for step in range(1, T + 1):
        At = A / float(step)
        lhs = I + gbt_alpha * At
        Abar = jnp.linalg.solve(lhs, I - (1.0 - gbt_alpha) * At)
        Bbar = jnp.linalg.solve(lhs, Bvec / float(step))
        abar_list.append(Abar.T)                                # pre-transposed: c @ Abar.T
        bvec_list.append(jnp.stack([Bbar, bm * Bbar], axis=0))  # [2, H]: Bbar_t, bm*Bbar_t

    abar = jnp.stack(abar_list, axis=0).astype(jnp.bfloat16)   # [T, H, H]
    bvec = jnp.stack(bvec_list, axis=0).astype(jnp.float32)    # [T, 2, H]

    return {"wix": wi_x.astype(jnp.bfloat16), "wih": wi_h.astype(jnp.bfloat16),
            "aux": aux, "abar": abar, "bvec": bvec}


def hippo_seq_ref(xs, h0, c0, p):
    """Pure-JAX reference: identical math (same bf16 matmul operands, f32 acc)."""
    wix, wih = p["wix"], p["wih"]
    bi = p["aux"][0:1, :]
    bh = p["aux"][1:2, :]
    wm = p["aux"][2:3, :]

    def step(carry, inp):
        x, abar_t, bvec_t = inp
        h_prev, c_prev = carry
        gi = (jnp.dot(x.astype(jnp.bfloat16), wix, preferred_element_type=jnp.float32)
              + jnp.dot(h_prev.astype(jnp.bfloat16), wih,
                        preferred_element_type=jnp.float32))
        gate = jax.nn.sigmoid(gi + bi + bh)
        new = jnp.tanh(gi + bi + gate * bh)
        h_t = (1.0 - gate) * new
        f_raw = jnp.sum(h_t * wm, axis=-1, keepdims=True)
        c_t = (jnp.dot(c_prev.astype(jnp.bfloat16), abar_t,
                       preferred_element_type=jnp.float32)
               + f_raw * bvec_t[0:1, :] + bvec_t[1:2, :])
        return (h_t, c_t), None

    (h_T, c_T), _ = jax.lax.scan(step, (h0, c0), (xs, p["abar"], p["bvec"]))
    return h_T, c_T


if __name__ == "__main__":
    T, B, D, H = 8, 32, 128, 128   # lane-dense H, sublane-dense batch tiles
    key = jax.random.PRNGKey(0)
    kx, kh, kc, kp = jax.random.split(key, 4)

    xs = jax.random.normal(kx, (T, B, D), jnp.float32)
    h0 = jax.random.normal(kh, (B, H), jnp.float32)
    c0 = jax.random.normal(kc, (B, H), jnp.float32)
    params = make_params(kp, D, H, T)

    h_T, c_T = jax.block_until_ready(hippo_cell_seq(xs, h0, c0, params))

    h_ref, c_ref = hippo_seq_ref(xs, h0, c0, params)
    assert jnp.allclose(h_T, h_ref, atol=1e-3, rtol=1e-3), \
        float(jnp.max(jnp.abs(h_T - h_ref)))
    assert jnp.allclose(c_T, c_ref, atol=1e-3, rtol=1e-3), \
        float(jnp.max(jnp.abs(c_T - c_ref)))

    print("KERNEL_OK")
</pallas_src>

<mosaic_0001>
module attributes {stable_mosaic.version = 11 : i64} {
  func.func @_hippo_seq_kernel(%arg0: i32, %arg1: i32, %arg2: memref<1x16x128xbf16, #tpu.memory_space<vmem>>, %arg3: memref<16x128xf32, #tpu.memory_space<vmem>>, %arg4: memref<16x128xf32, #tpu.memory_space<vmem>>, %arg5: memref<128x128xbf16, #tpu.memory_space<vmem>>, %arg6: memref<128x128xbf16, #tpu.memory_space<vmem>>, %arg7: memref<8x128xf32, #tpu.memory_space<vmem>>, %arg8: memref<1x128x128xbf16, #tpu.memory_space<vmem>>, %arg9: memref<1x2x128xf32, #tpu.memory_space<vmem>>, %arg10: memref<16x128xf32, #tpu.memory_space<vmem>>, %arg11: memref<16x128xf32, #tpu.memory_space<vmem>>) attributes {dimension_semantics = [#tpu.dimension_semantics<parallel>, #tpu.dimension_semantics<arbitrary>], iteration_bounds = array<i64: 2, 8>, scalar_prefetch = 0 : i64, scratch_operands = 0 : i64, tpu.core_type = #tpu.core_type<tc>, window_params = [{transform_indices = @transform_0, window_bounds = array<i64: 1, 16, 128>}, {transform_indices = @transform_1, window_bounds = array<i64: 16, 128>}, {transform_indices = @transform_2, window_bounds = array<i64: 16, 128>}, {pipeline_mode = #tpu.pipeline_mode<synchronous>, transform_indices = @transform_3, window_bounds = array<i64: 128, 128>}, {pipeline_mode = #tpu.pipeline_mode<synchronous>, transform_indices = @transform_4, window_bounds = array<i64: 128, 128>}, {pipeline_mode = #tpu.pipeline_mode<synchronous>, transform_indices = @transform_5, window_bounds = array<i64: 8, 128>}, {transform_indices = @transform_6, window_bounds = array<i64: 1, 128, 128>}, {transform_indices = @transform_7, window_bounds = array<i64: 1, 2, 128>}, {transform_indices = @transform_8, window_bounds = array<i64: 16, 128>}, {transform_indices = @transform_9, window_bounds = array<i64: 16, 128>}]} {
    %c0_i32 = arith.constant 0 : i32
    %0 = arith.cmpi eq, %arg1, %c0_i32 : i32
    %1 = arith.extui %0 : i1 to i32
    %c0_i32_0 = arith.constant 0 : i32
    %2 = arith.cmpi ne, %1, %c0_i32_0 : i32
    scf.if %2 {
      %c0_34 = arith.constant 0 : index
      %c0_35 = arith.constant 0 : index
      %53 = vector.load %arg3[%c0_34, %c0_35] : memref<16x128xf32, #tpu.memory_space<vmem>>, vector<16x128xf32>
      %c0_36 = arith.constant 0 : index
      %c0_37 = arith.constant 0 : index
      %54 = vector.load %arg10[%c0_36, %c0_37] : memref<16x128xf32, #tpu.memory_space<vmem>>, vector<16x128xf32>
      tpu.vector_store %arg10[%c0_36, %c0_37], %53 {strides = array<i32>} : memref<16x128xf32, #tpu.memory_space<vmem>>, vector<16x128xf32>,
      %c0_38 = arith.constant 0 : index
      %c0_39 = arith.constant 0 : index
      %55 = vector.load %arg4[%c0_38, %c0_39] : memref<16x128xf32, #tpu.memory_space<vmem>>, vector<16x128xf32>
      %c0_40 = arith.constant 0 : index
      %c0_41 = arith.constant 0 : index
      %56 = vector.load %arg11[%c0_40, %c0_41] : memref<16x128xf32, #tpu.memory_space<vmem>>, vector<16x128xf32>
      tpu.vector_store %arg11[%c0_40, %c0_41], %55 {strides = array<i32>} : memref<16x128xf32, #tpu.memory_space<vmem>>, vector<16x128xf32>,
    } else {
    }
    %c0 = arith.constant 0 : index
    %c0_1 = arith.constant 0 : index
    %3 = vector.load %arg10[%c0, %c0_1] : memref<16x128xf32, #tpu.memory_space<vmem>>, vector<16x128xf32>
    %c0_2 = arith.constant 0 : index
    %c0_3 = arith.constant 0 : index
    %4 = vector.load %arg11[%c0_2, %c0_3] : memref<16x128xf32, #tpu.memory_space<vmem>>, vector<16x128xf32>
    %c0_4 = arith.constant 0 : index
    %c0_5 = arith.constant 0 : index
    %c0_6 = arith.constant 0 : index
    %5 = vector.load %arg2[%c0_4, %c0_5, %c0_6] : memref<1x16x128xbf16, #tpu.memory_space<vmem>>, vector<1x16x128xbf16>
    %6 = vector.shape_cast %5 : vector<1x16x128xbf16> to vector<16x128xbf16>
    %c0_7 = arith.constant 0 : index
    %c0_8 = arith.constant 0 : index
    %7 = vector.load %arg5[%c0_7, %c0_8] : memref<128x128xbf16, #tpu.memory_space<vmem>>, vector<128x128xbf16>
    %cst = arith.constant dense<0.000000e+00> : vector<16x128xf32>
    %8 = tpu.matmul %6, %7, %cst {dimension_numbers = #tpu.dot_dimension_numbers<[1], [0], [0], [1], [0, 0, 1, 1], [], []>} : vector<16x128xbf16>, vector<128x128xbf16>, vector<16x128xf32> -> vector<16x128xf32>
    %9 = arith.truncf %3 : vector<16x128xf32> to vector<16x128xbf16>
    %c0_9 = arith.constant 0 : index
    %c0_10 = arith.constant 0 : index
    %10 = vector.load %arg6[%c0_9, %c0_10] : memref<128x128xbf16, #tpu.memory_space<vmem>>, vector<128x128xbf16>
    %cst_11 = arith.constant dense<0.000000e+00> : vector<16x128xf32>
    %11 = tpu.matmul %9, %10, %cst_11 {dimension_numbers = #tpu.dot_dimension_numbers<[1], [0], [0], [1], [0, 0, 1, 1], [], []>} : vector<16x128xbf16>, vector<128x128xbf16>, vector<16x128xf32> -> vector<16x128xf32>
    %12 = arith.addf %8, %11 : vector<16x128xf32>
    %c0_12 = arith.constant 0 : index
    %c0_13 = arith.constant 0 : index
    %13 = vector.load %arg7[%c0_12, %c0_13] : memref<8x128xf32, #tpu.memory_space<vmem>>, vector<1x128xf32>
    %c1 = arith.constant 1 : index
    %c0_14 = arith.constant 0 : index
    %14 = vector.load %arg7[%c1, %c0_14] : memref<8x128xf32, #tpu.memory_space<vmem>>, vector<1x128xf32>
    %c2 = arith.constant 2 : index
    %c0_15 = arith.constant 0 : index
    %15 = vector.load %arg7[%c2, %c0_15] : memref<8x128xf32, #tpu.memory_space<vmem>>, vector<1x128xf32>
    %c3 = arith.constant 3 : index
    %c0_16 = arith.constant 0 : index
    %16 = vector.load %arg7[%c3, %c0_16] : memref<8x128xf32, #tpu.memory_space<vmem>>, vector<1x128xf32>
    %17 = vector.broadcast %16 : vector<1x128xf32> to vector<16x128xf32>
    %18 = arith.addf %12, %17 : vector<16x128xf32>
    %19 = arith.negf %18 : vector<16x128xf32>
    %20 = math.exp %19 : vector<16x128xf32>
    %cst_17 = arith.constant 1.000000e+00 : f32
    %21 = vector.broadcast %cst_17 : f32 to vector<16x128xf32>
    %22 = arith.addf %21, %20 : vector<16x128xf32>
    %23 = arith.divf %21, %22 : vector<16x128xf32>
    %24 = vector.broadcast %13 : vector<1x128xf32> to vector<16x128xf32>
    %25 = arith.addf %12, %24 : vector<16x128xf32>
    %26 = vector.broadcast %14 : vector<1x128xf32> to vector<16x128xf32>
    %27 = arith.mulf %23, %26 : vector<16x128xf32>
    %28 = arith.addf %25, %27 : vector<16x128xf32>
    %29 = math.tanh %28 : vector<16x128xf32>
    %cst_18 = arith.constant 1.000000e+00 : f32
    %30 = vector.broadcast %cst_18 : f32 to vector<16x128xf32>
    %31 = arith.subf %30, %23 : vector<16x128xf32>
    %32 = arith.mulf %31, %29 : vector<16x128xf32>
    %33 = vector.broadcast %15 : vector<1x128xf32> to vector<16x128xf32>
    %34 = arith.mulf %32, %33 : vector<16x128xf32>
    %cst_19 = arith.constant dense<0.000000e+00> : vector<16xf32>
    %35 = vector.multi_reduction <add>, %34, %cst_19 [1] : vector<16x128xf32> to vector<16xf32>
    %36 = vector.shape_cast %35 : vector<16xf32> to vector<16x1xf32>
    %37 = arith.truncf %4 : vector<16x128xf32> to vector<16x128xbf16>
    %c0_20 = arith.constant 0 : index
    %c0_21 = arith.constant 0 : index
    %c0_22 = arith.constant 0 : index
    %38 = vector.load %arg8[%c0_20, %c0_21, %c0_22] : memref<1x128x128xbf16, #tpu.memory_space<vmem>>, vector<1x128x128xbf16>
    %39 = vector.shape_cast %38 : vector<1x128x128xbf16> to vector<128x128xbf16>
    %cst_23 = arith.constant dense<0.000000e+00> : vector<16x128xf32>
    %40 = tpu.matmul %37, %39, %cst_23 {dimension_numbers = #tpu.dot_dimension_numbers<[1], [0], [0], [1], [0, 0, 1, 1], [], []>} : vector<16x128xbf16>, vector<128x128xbf16>, vector<16x128xf32> -> vector<16x128xf32>
    %c0_24 = arith.constant 0 : index
    %c0_25 = arith.constant 0 : index
    %c0_26 = arith.constant 0 : index
    %41 = vector.load %arg9[%c0_24, %c0_25, %c0_26] : memref<1x2x128xf32, #tpu.memory_space<vmem>>, vector<1x1x128xf32>
    %42 = vector.shape_cast %41 : vector<1x1x128xf32> to vector<1x128xf32>
    %43 = vector.broadcast %36 : vector<16x1xf32> to vector<16x128xf32>
    %44 = vector.broadcast %42 : vector<1x128xf32> to vector<16x128xf32>
    %45 = arith.mulf %43, %44 : vector<16x128xf32>
    %46 = arith.addf %40, %45 : vector<16x128xf32>
    %c0_27 = arith.constant 0 : index
    %c1_28 = arith.constant 1 : index
    %c0_29 = arith.constant 0 : index
    %47 = vector.load %arg9[%c0_27, %c1_28, %c0_29] : memref<1x2x128xf32, #tpu.memory_space<vmem>>, vector<1x1x128xf32>
    %48 = vector.shape_cast %47 : vector<1x1x128xf32> to vector<1x128xf32>
    %49 = vector.broadcast %48 : vector<1x128xf32> to vector<16x128xf32>
    %50 = arith.addf %46, %49 : vector<16x128xf32>
    %c0_30 = arith.constant 0 : index
    %c0_31 = arith.constant 0 : index
    %51 = vector.load %arg10[%c0_30, %c0_31] : memref<16x128xf32, #tpu.memory_space<vmem>>, vector<16x128xf32>
    tpu.vector_store %arg10[%c0_30, %c0_31], %32 {strides = array<i32>} : memref<16x128xf32, #tpu.memory_space<vmem>>, vector<16x128xf32>,
    %c0_32 = arith.constant 0 : index
    %c0_33 = arith.constant 0 : index
    %52 = vector.load %arg11[%c0_32, %c0_33] : memref<16x128xf32, #tpu.memory_space<vmem>>, vector<16x128xf32>
    tpu.vector_store %arg11[%c0_32, %c0_33], %50 {strides = array<i32>} : memref<16x128xf32, #tpu.memory_space<vmem>>, vector<16x128xf32>,
    return
  }
  func.func @transform_0(%arg0: i32, %arg1: i32) -> (i32, i32, i32) {
    %c0_i32 = arith.constant 0 : i32
    %c0_i32_0 = arith.constant 0 : i32
    return %arg1, %arg0, %c0_i32 : i32, i32, i32
  }
  func.func @transform_1(%arg0: i32, %arg1: i32) -> (i32, i32) {
    %c0_i32 = arith.constant 0 : i32
    %c0_i32_0 = arith.constant 0 : i32
    return %arg0, %c0_i32 : i32, i32
  }
  func.func @transform_2(%arg0: i32, %arg1: i32) -> (i32, i32) {
    %c0_i32 = arith.constant 0 : i32
    %c0_i32_0 = arith.constant 0 : i32
    return %arg0, %c0_i32 : i32, i32
  }
  func.func @transform_3(%arg0: i32, %arg1: i32) -> (i32, i32) {
    %c0_i32 = arith.constant 0 : i32
    %c0_i32_0 = arith.constant 0 : i32
    %c0_i32_1 = arith.constant 0 : i32
    return %c0_i32, %c0_i32_0 : i32, i32
  }
  func.func @transform_4(%arg0: i32, %arg1: i32) -> (i32, i32) {
    %c0_i32 = arith.constant 0 : i32
    %c0_i32_0 = arith.constant 0 : i32
    %c0_i32_1 = arith.constant 0 : i32
    return %c0_i32, %c0_i32_0 : i32, i32
  }
  func.func @transform_5(%arg0: i32, %arg1: i32) -> (i32, i32) {
    %c0_i32 = arith.constant 0 : i32
    %c0_i32_0 = arith.constant 0 : i32
    %c0_i32_1 = arith.constant 0 : i32
    return %c0_i32, %c0_i32_0 : i32, i32
  }
  func.func @transform_6(%arg0: i32, %arg1: i32) -> (i32, i32, i32) {
    %c0_i32 = arith.constant 0 : i32
    %c0_i32_0 = arith.constant 0 : i32
    %c0_i32_1 = arith.constant 0 : i32
    return %arg1, %c0_i32, %c0_i32_0 : i32, i32, i32
  }
  func.func @transform_7(%arg0: i32, %arg1: i32) -> (i32, i32, i32) {
    %c0_i32 = arith.constant 0 : i32
    %c0_i32_0 = arith.constant 0 : i32
    %c0_i32_1 = arith.constant 0 : i32
    return %arg1, %c0_i32, %c0_i32_0 : i32, i32, i32
  }
  func.func @transform_8(%arg0: i32, %arg1: i32) -> (i32, i32) {
    %c0_i32 = arith.constant 0 : i32
    %c0_i32_0 = arith.constant 0 : i32
    return %arg0, %c0_i32 : i32, i32
  }
  func.func @transform_9(%arg0: i32, %arg1: i32) -> (i32, i32) {
    %c0_i32 = arith.constant 0 : i32
    %c0_i32_0 = arith.constant 0 : i32
    return %arg0, %c0_i32 : i32, i32
  }
}

</mosaic_0001>

<llo_original>
// kernel: tpu_custom_call.1
$region0: #{tpu_custom_call.1}
  #allocation0 [shape = 'u32[]', space=smem, size = 0x4, offset = 0x4, fixed_abs, tag = 'smem constant byte address 0x4 - core index']
  #allocation1 [shape = 'u32[144,128]{1,0:T(1,128)}', space=vmem, size = 0x12000, scoped, tag = 'internal scratch']
  %s0 = inlined_call_operand.hbm [shape: bf16[8,32,128], index: 0, kind: input, shape index: {}]
  %s1 = inlined_call_operand.hbm [shape: f32[32,128], index: 1, kind: input, shape index: {}]
  %s2 = inlined_call_operand.hbm [shape: f32[32,128], index: 2, kind: input, shape index: {}]
  %s3 = inlined_call_operand.hbm [shape: bf16[128,128], index: 3, kind: input, shape index: {}]
  %s4 = inlined_call_operand.hbm [shape: bf16[128,128], index: 4, kind: input, shape index: {}]
  %s5 = inlined_call_operand.vmem [shape: f32[8,128], index: 5, kind: input, shape index: {}]
  %s6 = inlined_call_operand.hbm [shape: bf16[8,128,128], index: 6, kind: input, shape index: {}]
  %s7 = inlined_call_operand.vmem [shape: f32[8,2,128], index: 7, kind: input, shape index: {}]
  %s8 = inlined_call_operand.hbm [shape: f32[32,128], index: 8, kind: output, shape index: {0}]
  %s9 = inlined_call_operand.hbm [shape: f32[32,128], index: 9, kind: output, shape index: {1}]
  %10 = xla_tuple %s8, %s9
  %s11 = sld [smem:[#allocation0]]
  $region101: #{tpu_custom_call.1} parent=0
    _
  %s13 = ssub.s32 1, %s11
  %s14 = scalar_select 0, %s13, %s11
  $region1: #{tpu_custom_call.1} parent=0
    #allocation2 [shape = 'u8[8192]{0}', space=vmem, size = 0x2000, scoped, tag = 'input window, operand 0']
    #allocation3 [shape = 's32[2]{0}', space=sflag, size = 0x8, scoped, tag = 'scoped memory for tpu_custom_call.1']
    #allocation4 [shape = 's32[2]{0}', space=sflag, size = 0x8, scoped, tag = 'scoped memory for tpu_custom_call.1']
    #allocation5 [shape = 'u8[16384]{0}', space=vmem, size = 0x4000, scoped, tag = 'input window, operand 1']
    #allocation6 [shape = 's32[2]{0}', space=sflag, size = 0x8, scoped, tag = 'scoped memory for tpu_custom_call.1']
    #allocation7 [shape = 'u8[16384]{0}', space=vmem, size = 0x4000, scoped, tag = 'input window, operand 2']
    #allocation8 [shape = 'u8[32768]{0}', space=vmem, size = 0x8000, scoped, tag = 'input window, operand 3, single buffered']
    #allocation9 [shape = 's32[1]{0}', space=sflag, size = 0x4, scoped, tag = 'scoped memory for tpu_custom_call.1']
    #allocation10 [shape = 'u8[32768]{0}', space=vmem, size = 0x8000, scoped, tag = 'input window, operand 4, single buffered']
    #allocation11 [shape = 'u8[65536]{0}', space=vmem, size = 0x10000, scoped, tag = 'input window, operand 6']
    #allocation12 [shape = 's32[2]{0}', space=sflag, size = 0x8, scoped, tag = 'scoped memory for tpu_custom_call.1']
    #allocation13 [shape = 'u8[16384]{0}', space=vmem, size = 0x4000, scoped, tag = 'output window, operand 0']
    #allocation14 [shape = 'u8[16384]{0}', space=vmem, size = 0x4000, scoped, tag = 'output window, operand 1']
    #allocation15 [shape = 's32[2]{0}', space=sflag, size = 0x8, scoped, tag = 'scoped memory for tpu_custom_call.1']
    %15 = vsyncpa [#allocation3], 0
    %s16 = scalar_lea.sflag [#allocation3], 1
    %17 = vsyncpa %s16, 0
    %18 = vsyncpa [#allocation6], 0
    %s19 = scalar_lea.sflag [#allocation6], 1
    %20 = vsyncpa %s19, 0
    %21 = vsyncpa [#allocation9], 0
    %22 = vsyncpa [#allocation12], 0
    %s23 = scalar_lea.sflag [#allocation12], 1
    %24 = vsyncpa %s23, 0
    %25 = vsyncpa [#allocation4], 0
    %s26 = scalar_lea.sflag [#allocation4], 1
    %27 = vsyncpa %s26, 0
    %28 = vsyncpa [#allocation15], 0
    %s29 = scalar_lea.sflag [#allocation15], 1
    %30 = vsyncpa %s29, 0
    loop: start=0, step=1, limit=18
    $region2: #{tpu_custom_call.1} parent=1 // loop_pre_header
      _
    $region3: #{tpu_custom_call.1} parent=1 // loop_header
      %s32 = sphi 0, %s36
      %p33 = scmp.ge.s32.totalorder %s32, 18
      %s39 = sphi 0, %s51
      %s40 = sphi 0, %s47
      %s41 = sphi 0, %s39
      %s42 = sphi 0, %s40
      %s43 = sphi 0, %s41
      %s44 = sphi 0, %s42
      %s56 = sphi 0, %s58
      %s59 = sphi 0, %s56
      %s60 = sphi 0, %s59
      %s76 = sphi 0, %s60
      %s82 = sphi 0, %s84
      %s85 = sphi 0, %s82
      %s86 = sphi 0, %s85
      %s102 = sphi 0, %s86
      %s108 = sphi 0, %s110
      %s111 = sphi 0, %s108
      %s112 = sphi 0, %s111
      %s128 = sphi 0, %s112
      %s132 = sphi 0, %s132
      %s134 = sphi 0, %s132
      %s135 = sphi 0, %s134
      %s149 = sphi 0, %s135
      %s153 = sphi 0, %s153
      %s155 = sphi 0, %s153
      %s156 = sphi 0, %s155
      %s170 = sphi 0, %s156
      %s174 = sphi 0, %s174
      %s176 = sphi 0, %s174
      %s177 = sphi 0, %s176
      %s191 = sphi 0, %s177
      %s197 = sphi 0, %s199
      %s200 = sphi 0, %s197
      %s201 = sphi 0, %s200
      %s217 = sphi 0, %s201
      %s223 = sphi 0, %s225
      %s226 = sphi 0, %s223
      %s227 = sphi 0, %s226
      %s243 = sphi 0, %s227
      %s249 = sphi 0, %s251
      %s252 = sphi 0, %s249
      %s253 = sphi 0, %s252
      %s269 = sphi 0, %s253
      %s275 = sphi 0, %s277
      %s278 = sphi 0, %s275
      %s279 = sphi 0, %s278
      %s295 = sphi 0, %s279
    $region4: #{tpu_custom_call.1} parent=1 // loop_header_branch
      %35 = sbr.rel (%p33) target = $region8
    $region5: #{tpu_custom_call.1} parent=1 // loop_body
      %s37 = ssub.s32 %s32, 1
      %s38 = ssub.s32 %s32, 2
      %s45 = sadd.s32 1, %s40
      %p46 = scmp.ge.s32.totalorder %s45, 8
      %s47 = scalar_select %p46, 0, %s45
      %s48 = sadd.s32 1, %s39
      %s49 = scalar_select %p46, %s48, %s39
      %p50 = scmp.ge.s32.totalorder %s49, 2
      %s51 = scalar_select %p50, 0, %s49
      %s52 = ssub.s32 %s40, %s47
      %s53 = ssub.s32 %s39, %s51
      %s54 = sor.u32 %s52, %s53
      %p55 = scmp.eq.s32.totalorder %s54, 0
      %s57 = sadd.s32 %s56, 1
      %s58 = scalar_select %p55, %s56, %s57
      %p61 = pneg %p55
      %p62 = scmp.eq.s32.totalorder %s32, 15
      %p63 = por %p61, %p62
      %p64 = scmp.ne.s32.totalorder %s56, %s59
      %p65 = scmp.eq.s32.totalorder %s32, 0
      %p66 = por %p64, %p65
      %p67 = scmp.ne.s32.totalorder %s56, %s59
      %p68 = scmp.eq.s32.totalorder %s37, 15
      %p69 = por %p67, %p68
      %p70 = scmp.ne.s32.totalorder %s59, %s60
      %p71 = scmp.eq.s32.totalorder %s37, 0
      %p72 = por %p70, %p71
      %p73 = scmp.ne.s32.totalorder %s59, %s60
      %p74 = scmp.eq.s32.totalorder %s38, 15
      %p75 = por %p73, %p74
      %p77 = scmp.ne.s32.totalorder %s60, %s76
      %p78 = scmp.eq.s32.totalorder %s38, 0
      %p79 = por %p77, %p78
      %s80 = ssub.s32 %s39, %s51
      %p81 = scmp.eq.s32.totalorder %s80, 0
      %s83 = sadd.s32 %s82, 1
      %s84 = scalar_select %p81, %s82, %s83
      %p87 = pneg %p81
      %p88 = scmp.eq.s32.totalorder %s32, 15
      %p89 = por %p87, %p88
      %p90 = scmp.ne.s32.totalorder %s82, %s85
      %p91 = scmp.eq.s32.totalorder %s32, 0
      %p92 = por %p90, %p91
      %p93 = scmp.ne.s32.totalorder %s82, %s85
      %p94 = scmp.eq.s32.totalorder %s37, 15
      %p95 = por %p93, %p94
      %p96 = scmp.ne.s32.totalorder %s85, %s86
      %p97 = scmp.eq.s32.totalorder %s37, 0
      %p98 = por %p96, %p97
      %p99 = scmp.ne.s32.totalorder %s85, %s86
      %p100 = scmp.eq.s32.totalorder %s38, 15
      %p101 = por %p99, %p100
      %p103 = scmp.ne.s32.totalorder %s86, %s102
      %p104 = scmp.eq.s32.totalorder %s38, 0
      %p105 = por %p103, %p104
      %s106 = ssub.s32 %s39, %s51
      %p107 = scmp.eq.s32.totalorder %s106, 0
      %s109 = sadd.s32 %s108, 1
      %s110 = scalar_select %p107, %s108, %s109
      %p113 = pneg %p107
      %p114 = scmp.eq.s32.totalorder %s32, 15
      %p115 = por %p113, %p114
      %p116 = scmp.ne.s32.totalorder %s108, %s111
      %p117 = scmp.eq.s32.totalorder %s32, 0
      %p118 = por %p116, %p117
      %p119 = scmp.ne.s32.totalorder %s108, %s111
      %p120 = scmp.eq.s32.totalorder %s37, 15
      %p121 = por %p119, %p120
      %p122 = scmp.ne.s32.totalorder %s111, %s112
      %p123 = scmp.eq.s32.totalorder %s37, 0
      %p124 = por %p122, %p123
      %p125 = scmp.ne.s32.totalorder %s111, %s112
      %p126 = scmp.eq.s32.totalorder %s38, 15
      %p127 = por %p125, %p126
      %p129 = scmp.ne.s32.totalorder %s112, %s128
      %p130 = scmp.eq.s32.totalorder %s38, 0
      %p131 = por %p129, %p130
      %s133 = sadd.s32 %s132, 1
      %p136 = scmp.eq.s32.totalorder %s32, 15
      %p137 = scmp.ne.s32.totalorder %s132, %s134
      %p138 = scmp.eq.s32.totalorder %s32, 0
      %p139 = por %p137, %p138
      %p140 = scmp.ne.s32.totalorder %s132, %s134
      %p141 = scmp.eq.s32.totalorder %s37, 15
      %p142 = por %p140, %p141
      %p143 = scmp.ne.s32.totalorder %s134, %s135
      %p144 = scmp.eq.s32.totalorder %s37, 0
      %p145 = por %p143, %p144
      %p146 = scmp.ne.s32.totalorder %s134, %s135
      %p147 = scmp.eq.s32.totalorder %s38, 15
      %p148 = por %p146, %p147
      %p150 = scmp.ne.s32.totalorder %s135, %s149
      %p151 = scmp.eq.s32.totalorder %s38, 0
      %p152 = por %p150, %p151
      %s154 = sadd.s32 %s153, 1
      %p157 = scmp.eq.s32.totalorder %s32, 15
      %p158 = scmp.ne.s32.totalorder %s153, %s155
      %p159 = scmp.eq.s32.totalorder %s32, 0
      %p160 = por %p158, %p159
      %p161 = scmp.ne.s32.totalorder %s153, %s155
      %p162 = scmp.eq.s32.totalorder %s37, 15
      %p163 = por %p161, %p162
      %p164 = scmp.ne.s32.totalorder %s155, %s156
      %p165 = scmp.eq.s32.totalorder %s37, 0
      %p166 = por %p164, %p165
      %p167 = scmp.ne.s32.totalorder %s155, %s156
      %p168 = scmp.eq.s32.totalorder %s38, 15
      %p169 = por %p167, %p168
      %p171 = scmp.ne.s32.totalorder %s156, %s170
      %p172 = scmp.eq.s32.totalorder %s38, 0
      %p173 = por %p171, %p172
      %s175 = sadd.s32 %s174, 1
      %p178 = scmp.eq.s32.totalorder %s32, 15
      %p179 = scmp.ne.s32.totalorder %s174, %s176
      %p180 = scmp.eq.s32.totalorder %s32, 0
      %p181 = por %p179, %p180
      %p182 = scmp.ne.s32.totalorder %s174, %s176
      %p183 = scmp.eq.s32.totalorder %s37, 15
      %p184 = por %p182, %p183
      %p185 = scmp.ne.s32.totalorder %s176, %s177
      %p186 = scmp.eq.s32.totalorder %s37, 0
      %p187 = por %p185, %p186
      %p188 = scmp.ne.s32.totalorder %s176, %s177
      %p189 = scmp.eq.s32.totalorder %s38, 15
      %p190 = por %p188, %p189
      %p192 = scmp.ne.s32.totalorder %s177, %s191
      %p193 = scmp.eq.s32.totalorder %s38, 0
      %p194 = por %p192, %p193
      %s195 = ssub.s32 %s40, %s47
      %p196 = scmp.eq.s32.totalorder %s195, 0
      %s198 = sadd.s32 %s197, 1
      %s199 = scalar_select %p196, %s197, %s198
      %p202 = pneg %p196
      %p203 = scmp.eq.s32.totalorder %s32, 15
      %p204 = por %p202, %p203
      %p205 = scmp.ne.s32.totalorder %s197, %s200
      %p206 = scmp.eq.s32.totalorder %s32, 0
      %p207 = por %p205, %p206
      %p208 = scmp.ne.s32.totalorder %s197, %s200
      %p209 = scmp.eq.s32.totalorder %s37, 15
      %p210 = por %p208, %p209
      %p211 = scmp.ne.s32.totalorder %s200, %s201
      %p212 = scmp.eq.s32.totalorder %s37, 0
      %p213 = por %p211, %p212
      %p214 = scmp.ne.s32.totalorder %s200, %s201
      %p215 = scmp.eq.s32.totalorder %s38, 15
      %p216 = por %p214, %p215
      %p218 = scmp.ne.s32.totalorder %s201, %s217
      %p219 = scmp.eq.s32.totalorder %s38, 0
      %p220 = por %p218, %p219
      %s221 = ssub.s32 %s40, %s47
      %p222 = scmp.eq.s32.totalorder %s221, 0
      %s224 = sadd.s32 %s223, 1
      %s225 = scalar_select %p222, %s223, %s224
      %p228 = pneg %p222
      %p229 = scmp.eq.s32.totalorder %s32, 15
      %p230 = por %p228, %p229
      %p231 = scmp.ne.s32.totalorder %s223, %s226
      %p232 = scmp.eq.s32.totalorder %s32, 0
      %p233 = por %p231, %p232
      %p234 = scmp.ne.s32.totalorder %s223, %s226
      %p235 = scmp.eq.s32.totalorder %s37, 15
      %p236 = por %p234, %p235
      %p237 = scmp.ne.s32.totalorder %s226, %s227
      %p238 = scmp.eq.s32.totalorder %s37, 0
      %p239 = por %p237, %p238
      %p240 = scmp.ne.s32.totalorder %s226, %s227
      %p241 = scmp.eq.s32.totalorder %s38, 15
      %p242 = por %p240, %p241
      %p244 = scmp.ne.s32.totalorder %s227, %s243
      %p245 = scmp.eq.s32.totalorder %s38, 0
      %p246 = por %p244, %p245
      %s247 = ssub.s32 %s39, %s51
      %p248 = scmp.eq.s32.totalorder %s247, 0
      %s250 = sadd.s32 %s249, 1
      %s251 = scalar_select %p248, %s249, %s250
      %p254 = pneg %p248
      %p255 = scmp.eq.s32.totalorder %s32, 15
      %p256 = por %p254, %p255
      %p257 = scmp.ne.s32.totalorder %s249, %s252
      %p258 = scmp.eq.s32.totalorder %s32, 0
      %p259 = por %p257, %p258
      %p260 = scmp.ne.s32.totalorder %s249, %s252
      %p261 = scmp.eq.s32.totalorder %s37, 15
      %p262 = por %p260, %p261
      %p263 = scmp.ne.s32.totalorder %s252, %s253
      %p264 = scmp.eq.s32.totalorder %s37, 0
      %p265 = por %p263, %p264
      %p266 = scmp.ne.s32.totalorder %s252, %s253
      %p267 = scmp.eq.s32.totalorder %s38, 15
      %p268 = por %p266, %p267
      %p270 = scmp.ne.s32.totalorder %s253, %s269
      %p271 = scmp.eq.s32.totalorder %s38, 0
      %p272 = por %p270, %p271
      %s273 = ssub.s32 %s39, %s51
      %p274 = scmp.eq.s32.totalorder %s273, 0
      %s276 = sadd.s32 %s275, 1
      %s277 = scalar_select %p274, %s275, %s276
      %p280 = pneg %p274
      %p281 = scmp.eq.s32.totalorder %s32, 15
      %p282 = por %p280, %p281
      %p283 = scmp.ne.s32.totalorder %s275, %s278
      %p284 = scmp.eq.s32.totalorder %s32, 0
      %p285 = por %p283, %p284
      %p286 = scmp.ne.s32.totalorder %s275, %s278
      %p287 = scmp.eq.s32.totalorder %s37, 15
      %p288 = por %p286, %p287
      %p289 = scmp.ne.s32.totalorder %s278, %s279
      %p290 = scmp.eq.s32.totalorder %s37, 0
      %p291 = por %p289, %p290
      %p292 = scmp.ne.s32.totalorder %s278, %s279
      %p293 = scmp.eq.s32.totalorder %s38, 15
      %p294 = por %p292, %p293
      %p296 = scmp.ne.s32.totalorder %s279, %s295
      %p297 = scmp.eq.s32.totalorder %s38, 0
      %p298 = por %p296, %p297
      %p299 = scmp.le.s32.totalorder 1, %s32
      %p300 = scmp.lt.s32.totalorder %s32, 17
      %p301 = pnand %p299, %p300
      %p302 = pneg %p301
      // Predicated region
      $region9: #{tpu_custom_call.1} parent=5 // pred_check
        _
      $region10: #{tpu_custom_call.1} parent=5 // pred_check_branch
        %304 = sbr.rel (%p301) target = $region12
      $region11: #{tpu_custom_call.1} parent=5 // pred_region
        %s305 = ssub.s32 %s32, 1
        // Predicated region
        $region13: #{tpu_custom_call.1} parent=11 // pred_check
          %p306 = pneg %p145
        $region14: #{tpu_custom_call.1} parent=11 // pred_check_branch
          %308 = sbr.rel (%p306) target = $region16
        $region15: #{tpu_custom_call.1} parent=11 // pred_region
          %s310 = ssub.s32 1024, 1024
          %311 = vsyncadd [#allocation9], %s310
          %s312 = sshll.u32 [#allocation8], 4
          %s313 = int_to_ptr.vmem [resolvable:$true] %s312
          %318 = dma.hbm_to_vmem [thread:$0]  %s3, 1024, %s313, [#allocation9], 64, 64, 4
        $region16: #{tpu_custom_call.1} parent=11 // pred_fallthru
          _
        // Predicated region
        $region17: #{tpu_custom_call.1} parent=11 // pred_check
          %p319 = pneg %p166
        $region18: #{tpu_custom_call.1} parent=11 // pred_check_branch
          %321 = sbr.rel (%p319) target = $region20
        $region19: #{tpu_custom_call.1} parent=11 // pred_region
          %s323 = ssub.s32 1024, 1024
          %324 = vsyncadd [#allocation9], %s323
          %s325 = sshll.u32 [#allocation10], 4
          %s326 = int_to_ptr.vmem [resolvable:$true] %s325
          %331 = dma.hbm_to_vmem [thread:$0]  %s4, 1024, %s326, [#allocation9], 64, 64, 4
        $region20: #{tpu_custom_call.1} parent=11 // pred_fallthru
          _
        // Predicated region
        $region21: #{tpu_custom_call.1} parent=11 // pred_check
          %p332 = pneg %p187
        $region22: #{tpu_custom_call.1} parent=11 // pred_check_branch
          %334 = sbr.rel (%p332) target = $region24
        $region23: #{tpu_custom_call.1} parent=11 // pred_region
          _
        $region24: #{tpu_custom_call.1} parent=11 // pred_fallthru
          _
      $region12: #{tpu_custom_call.1} parent=5 // pred_fallthru
        _
      %p335 = scmp.lt.s32.totalorder %s32, 16
      // Predicated region
      $region25: #{tpu_custom_call.1} parent=5 // pred_check
        %p336 = pneg %p335
      $region26: #{tpu_custom_call.1} parent=5 // pred_check_branch
        %338 = sbr.rel (%p336) target = $region28
      $region27: #{tpu_custom_call.1} parent=5 // pred_region
        // Predicated region
        $region29: #{tpu_custom_call.1} parent=27 // pred_check
          %p339 = pneg %p66
        $region30: #{tpu_custom_call.1} parent=27 // pred_check_branch
          %341 = sbr.rel (%p339) target = $region32
        $region31: #{tpu_custom_call.1} parent=27 // pred_region
          %s342 = sand.u32 %s56, 1
          %s343 = scalar_lea.sflag [#allocation3], %s342
          %s344 = sand.u32 %s56, 1
          %s345 = smul.addr %s344, 8
          %s346 = scalar_lea.vmem [#allocation2], %s345
          %s347 = smul.u32 2, %s39
          %s349 = ssub.s32 128, 128
          %350 = vsyncadd %s343, %s349
          %s351 = smul.addr %s40, 4
          %s352 = sadd.s32 %s347, %s351
          %s353 = smul.addr %s352, 64
          %s354 = scalar_lea.hbm %s0, %s353
          %s355 = sshll.u32 %s346, 4
          %s356 = int_to_ptr.vmem [resolvable:$true] %s355
          %361 = dma.hbm_to_vmem [thread:$0]  %s354, 128, %s356, %s343, 64, 64, 4
        $region32: #{tpu_custom_call.1} parent=27 // pred_fallthru
          _
        // Predicated region
        $region33: #{tpu_custom_call.1} parent=27 // pred_check
          %p362 = pneg %p92
        $region34: #{tpu_custom_call.1} parent=27 // pred_check_branch
          %364 = sbr.rel (%p362) target = $region36
        $region35: #{tpu_custom_call.1} parent=27 // pred_region
          %s365 = sand.u32 %s32, 1
          %s366 = scalar_lea.sflag [#allocation6], %s365
          %s367 = sand.u32 %s82, 1
          %s368 = smul.addr %s367, 16
          %s369 = scalar_lea.vmem [#allocation5], %s368
          %s370 = smul.u32 2, %s39
          %s372 = ssub.s32 256, 256
          %373 = vsyncadd %s366, %s372
          %s374 = smul.addr %s370, 128
          %s375 = scalar_lea.hbm %s1, %s374
          %s376 = sshll.u32 %s369, 4
          %s377 = int_to_ptr.vmem [resolvable:$true] %s376
          %382 = dma.hbm_to_vmem [thread:$0]  %s375, 256, %s377, %s366, 128, 128, 8
        $region36: #{tpu_custom_call.1} parent=27 // pred_fallthru
          _
        // Predicated region
        $region37: #{tpu_custom_call.1} parent=27 // pred_check
          %p383 = pneg %p118
        $region38: #{tpu_custom_call.1} parent=27 // pred_check_branch
          %385 = sbr.rel (%p383) target = $region40
        $region39: #{tpu_custom_call.1} parent=27 // pred_region
          %s386 = sand.u32 %s32, 1
          %s387 = scalar_lea.sflag [#allocation6], %s386
          %s388 = sand.u32 %s108, 1
          %s389 = smul.addr %s388, 16
          %s390 = scalar_lea.vmem [#allocation7], %s389
          %s391 = smul.u32 2, %s39
          %s393 = ssub.s32 256, 256
          %394 = vsyncadd %s387, %s393
          %s395 = smul.addr %s391, 128
          %s396 = scalar_lea.hbm %s2, %s395
          %s397 = sshll.u32 %s390, 4
          %s398 = int_to_ptr.vmem [resolvable:$true] %s397
          %403 = dma.hbm_to_vmem [thread:$0]  %s396, 256, %s398, %s387, 128, 128, 8
        $region40: #{tpu_custom_call.1} parent=27 // pred_fallthru
          _
        // Predicated region
        $region41: #{tpu_custom_call.1} parent=27 // pred_check
          %p404 = pneg %p207
        $region42: #{tpu_custom_call.1} parent=27 // pred_check_branch
          %406 = sbr.rel (%p404) target = $region44
        $region43: #{tpu_custom_call.1} parent=27 // pred_region
          %s407 = sand.u32 %s197, 1
          %s408 = scalar_lea.sflag [#allocation12], %s407
          %s409 = sand.u32 %s197, 1
          %s410 = smul.addr %s409, 64
          %s411 = scalar_lea.vmem [#allocation11], %s410
          %s413 = ssub.s32 1024, 1024
          %414 = vsyncadd %s408, %s413
          %s415 = smul.addr %s40, 16
          %s416 = smul.addr %s415, 64
          %s417 = scalar_lea.hbm %s6, %s416
          %s418 = sshll.u32 %s411, 4
          %s419 = int_to_ptr.vmem [resolvable:$true] %s418
          %424 = dma.hbm_to_vmem [thread:$0]  %s417, 1024, %s419, %s408, 64, 64, 4
        $region44: #{tpu_custom_call.1} parent=27 // pred_fallthru
          _
        // Predicated region
        $region45: #{tpu_custom_call.1} parent=27 // pred_check
          %p425 = pneg %p233
        $region46: #{tpu_custom_call.1} parent=27 // pred_check_branch
          %427 = sbr.rel (%p425) target = $region48
        $region47: #{tpu_custom_call.1} parent=27 // pred_region
          %p428 = scmp.lt.s32.totalorder %s40, 7
          %s429 = scalar_select %p428, %s40, 7
          %s430 = smul.addr %s429, 2
          %s431 = scalar_lea.vmem %s7, %s430
        $region48: #{tpu_custom_call.1} parent=27 // pred_fallthru
          _
      $region28: #{tpu_custom_call.1} parent=5 // pred_fallthru
        _
      %p432 = scmp.le.s32.totalorder 1, %s32
      %p433 = scmp.lt.s32.totalorder %s32, 17
      %p434 = pnand %p432, %p433
      %p435 = pneg %p434
      // Predicated region
      $region49: #{tpu_custom_call.1} parent=5 // pred_check
        _
      $region50: #{tpu_custom_call.1} parent=5 // pred_check_branch
        %437 = sbr.rel (%p434) target = $region52
      $region51: #{tpu_custom_call.1} parent=5 // pred_region
        %s438 = ssub.s32 %s32, 1
        %s439 = sand.u32 %s59, 1
        %s440 = scalar_lea.sflag [#allocation3], %s439
        %s441 = sand.u32 %s59, 1
        %s442 = smul.addr %s441, 8
        %s443 = scalar_lea.vmem [#allocation2], %s442
        // Predicated region
        $region53: #{tpu_custom_call.1} parent=51 // pred_check
          %p444 = pneg %p72
        $region54: #{tpu_custom_call.1} parent=51 // pred_check_branch
          %446 = sbr.rel (%p444) target = $region56
        $region55: #{tpu_custom_call.1} parent=51 // pred_region
          %447 = dma.done %s440, 128
        $region56: #{tpu_custom_call.1} parent=51 // pred_fallthru
          _
        %s448 = sand.u32 %s37, 1
        %s449 = scalar_lea.sflag [#allocation6], %s448
        %s450 = sand.u32 %s85, 1
        %s451 = smul.addr %s450, 16
        %s452 = scalar_lea.vmem [#allocation5], %s451
        // Predicated region
        $region57: #{tpu_custom_call.1} parent=51 // pred_check
          %p453 = pneg %p98
        $region58: #{tpu_custom_call.1} parent=51 // pred_check_branch
          %455 = sbr.rel (%p453) target = $region60
        $region59: #{tpu_custom_call.1} parent=51 // pred_region
          %456 = dma.done %s449, 256
        $region60: #{tpu_custom_call.1} parent=51 // pred_fallthru
          _
        %s457 = sand.u32 %s37, 1
        %s458 = scalar_lea.sflag [#allocation6], %s457
        %s459 = sand.u32 %s111, 1
        %s460 = smul.addr %s459, 16
        %s461 = scalar_lea.vmem [#allocation7], %s460
        // Predicated region
        $region61: #{tpu_custom_call.1} parent=51 // pred_check
          %p462 = pneg %p124
        $region62: #{tpu_custom_call.1} parent=51 // pred_check_branch
          %464 = sbr.rel (%p462) target = $region64
        $region63: #{tpu_custom_call.1} parent=51 // pred_region
          %465 = dma.done %s458, 256
        $region64: #{tpu_custom_call.1} parent=51 // pred_fallthru
          _
        // Predicated region
        $region65: #{tpu_custom_call.1} parent=51 // pred_check
          %p466 = pneg %p145
        $region66: #{tpu_custom_call.1} parent=51 // pred_check_branch
          %468 = sbr.rel (%p466) target = $region68
        $region67: #{tpu_custom_call.1} parent=51 // pred_region
          %469 = dma.done [#allocation9], 1024
        $region68: #{tpu_custom_call.1} parent=51 // pred_fallthru
          _
        // Predicated region
        $region69: #{tpu_custom_call.1} parent=51 // pred_check
          %p470 = pneg %p166
        $region70: #{tpu_custom_call.1} parent=51 // pred_check_branch
          %472 = sbr.rel (%p470) target = $region72
        $region71: #{tpu_custom_call.1} parent=51 // pred_region
          %473 = dma.done [#allocation9], 1024
        $region72: #{tpu_custom_call.1} parent=51 // pred_fallthru
          _
        %s474 = sand.u32 %s200, 1
        %s475 = scalar_lea.sflag [#allocation12], %s474
        %s476 = sand.u32 %s200, 1
        %s477 = smul.addr %s476, 64
        %s478 = scalar_lea.vmem [#allocation11], %s477
        // Predicated region
        $region73: #{tpu_custom_call.1} parent=51 // pred_check
          %p479 = pneg %p213
        $region74: #{tpu_custom_call.1} parent=51 // pred_check_branch
          %481 = sbr.rel (%p479) target = $region76
        $region75: #{tpu_custom_call.1} parent=51 // pred_region
          %482 = dma.done %s475, 1024
        $region76: #{tpu_custom_call.1} parent=51 // pred_fallthru
          _
        %s483 = sand.u32 %s59, 1
        %s484 = scalar_lea.sflag [#allocation3], %s483
        %s485 = sand.u32 %s59, 1
        %s486 = smul.addr %s485, 8
        %s487 = scalar_lea.vmem [#allocation2], %s486
        %p488 = pneg %p72
        %p489 = pneg %p69
        %s490 = sand.u32 %s37, 1
        %s491 = scalar_lea.sflag [#allocation6], %s490
        %s492 = sand.u32 %s85, 1
        %s493 = smul.addr %s492, 16
        %s494 = scalar_lea.vmem [#allocation5], %s493
        %p495 = pneg %p98
        %p496 = pneg %p95
        %s497 = sand.u32 %s37, 1
        %s498 = scalar_lea.sflag [#allocation6], %s497
        %s499 = sand.u32 %s111, 1
        %s500 = smul.addr %s499, 16
        %s501 = scalar_lea.vmem [#allocation7], %s500
        %p502 = pneg %p124
        %p503 = pneg %p121
        %p504 = pneg %p145
        %p505 = pneg %p142
        %p506 = pneg %p166
        %p507 = pneg %p163
        %p508 = pneg %p187
        %p509 = pneg %p184
        %s510 = sand.u32 %s200, 1
        %s511 = scalar_lea.sflag [#allocation12], %s510
        %s512 = sand.u32 %s200, 1
        %s513 = smul.addr %s512, 64
        %s514 = scalar_lea.vmem [#allocation11], %s513
        %p515 = pneg %p213
        %p516 = pneg %p210
        %p517 = scmp.lt.s32.totalorder %s42, 7
        %s518 = scalar_select %p517, %s42, 7
        %s519 = smul.addr %s518, 2
        %s520 = scalar_lea.vmem %s7, %s519
        %p521 = pneg %p239
        %p522 = pneg %p236
        %p523 = pneg %p265
        %p524 = pneg %p262
        %s525 = sand.u32 %s252, 1
        %s526 = scalar_lea.sflag [#allocation4], %s525
        %s527 = sand.u32 %s252, 1
        %s528 = smul.addr %s527, 16
        %s529 = scalar_lea.vmem [#allocation13], %s528
        %p530 = pneg %p291
        %p531 = pneg %p288
        %s532 = sand.u32 %s278, 1
        %s533 = scalar_lea.sflag [#allocation15], %s532
        %s534 = sand.u32 %s278, 1
        %s535 = smul.addr %s534, 16
        %s536 = scalar_lea.vmem [#allocation14], %s535
        %s537 = smul.u32 2, %s41
        %s538 = smul.u32 2, %s41
        %s539 = smul.u32 2, %s41
        %p540 = scmp.lt.s32.totalorder %s42, 7
        %s541 = scalar_select %p540, %s42, 7
        %s542 = smul.addr %s541, 2
        %s543 = scalar_lea.vmem %s7, %s542
        %s544 = smul.u32 2, %s41
        %s545 = smul.u32 2, %s41
        %p547 = scmp.eq.s32.totalorder %s42, 0
        // Predicated region
        $region77: #{tpu_custom_call.1} parent=51 // pred_check
          %p548 = pneg %p547
        $region78: #{tpu_custom_call.1} parent=51 // pred_check_branch
          %550 = sbr.rel (%p548) target = $region80
        $region79: #{tpu_custom_call.1} parent=51 // pred_region
          %v551 = vld [vmem:[%s452] sm:$0xff]
          %v552 = vld [vmem:[%s452 + $0x8] sm:$0xff]
          %553 = vst [vmem:[%s529] sm:$0xff] %v551
          %554 = vst [vmem:[%s529 + $0x8] sm:$0xff] %v552
          %v555 = vld [vmem:[%s461] sm:$0xff]
          %v556 = vld [vmem:[%s461 + $0x8] sm:$0xff]
          %557 = vst [vmem:[%s536] sm:$0xff] %v555
          %558 = vst [vmem:[%s536 + $0x8] sm:$0xff] %v556
        $region80: #{tpu_custom_call.1} parent=51 // pred_fallthru
          _
        %v559 = vld [vmem:[%s529] sm:$0xff]
        %v560 = vld [vmem:[%s529 + $0x8] sm:$0xff]
        %v561 = vld [vmem:[%s536] sm:$0xff]
        %v562 = vld [vmem:[%s536 + $0x8] sm:$0xff]
        %v563 = vld [vmem:[%s443] sm:$0xf]
        %v564 = vld [vmem:[%s443 + $0x4] sm:$0xf]
        %v565 = vld [vmem:[#allocation8] sm:$0xf]
        %v566 = vld [vmem:[#allocation8 + $0x4] sm:$0xf]
        %v567 = vld [vmem:[#allocation8 + $0x8] sm:$0xf]
        %v568 = vld [vmem:[#allocation8 + $0xc] sm:$0xf]
        %v569 = vld [vmem:[#allocation8 + $0x10] sm:$0xf]
        %v570 = vld [vmem:[#allocation8 + $0x14] sm:$0xf]
        %v571 = vld [vmem:[#allocation8 + $0x18] sm:$0xf]
        %v572 = vld [vmem:[#allocation8 + $0x1c] sm:$0xf]
        %v573 = vld [vmem:[#allocation8 + $0x20] sm:$0xf]
        %v574 = vld [vmem:[#allocation8 + $0x24] sm:$0xf]
        %v575 = vld [vmem:[#allocation8 + $0x28] sm:$0xf]
        %v576 = vld [vmem:[#allocation8 + $0x2c] sm:$0xf]
        %v577 = vld [vmem:[#allocation8 + $0x30] sm:$0xf]
        %v578 = vld [vmem:[#allocation8 + $0x34] sm:$0xf]
        %v579 = vld [vmem:[#allocation8 + $0x38] sm:$0xf]
        %v580 = vld [vmem:[#allocation8 + $0x3c] sm:$0xf]
        %v581 = vpack.c.bf16 %v560, %v559
        %v582 = vld [vmem:[#allocation10] sm:$0xf]
        %v583 = vld [vmem:[#allocation10 + $0x4] sm:$0xf]
        %v584 = vld [vmem:[#allocation10 + $0x8] sm:$0xf]
        %v585 = vld [vmem:[#allocation10 + $0xc] sm:$0xf]
        %v586 = vld [vmem:[#allocation10 + $0x10] sm:$0xf]
        %v587 = vld [vmem:[#allocation10 + $0x14] sm:$0xf]
        %v588 = vld [vmem:[#allocation10 + $0x18] sm:$0xf]
        %v589 = vld [vmem:[#allocation10 + $0x1c] sm:$0xf]
        %v590 = vld [vmem:[#allocation10 + $0x20] sm:$0xf]
        %v591 = vld [vmem:[#allocation10 + $0x24] sm:$0xf]
        %v592 = vld [vmem:[#allocation10 + $0x28] sm:$0xf]
        %v593 = vld [vmem:[#allocation10 + $0x2c] sm:$0xf]
        %v594 = vld [vmem:[#allocation10 + $0x30] sm:$0xf]
        %v595 = vld [vmem:[#allocation10 + $0x34] sm:$0xf]
        %v596 = vld [vmem:[#allocation10 + $0x38] sm:$0xf]
        %v597 = vld [vmem:[#allocation10 + $0x3c] sm:$0xf]
        %v614 = vunpack.c.l.b16 %v582
        %v615 = vunpack.c.l.b16 %v583
        %v616 = vunpack.c.l.b16 %v584
        %v617 = vunpack.c.l.b16 %v585
        %v618 = vunpack.c.l.b16 %v586
        %v619 = vunpack.c.l.b16 %v587
        %v620 = vunpack.c.l.b16 %v588
        %v621 = vunpack.c.l.b16 %v589
        %v622 = vunpack.c.l.b16 %v590
        %v623 = vunpack.c.l.b16 %v591
        %v624 = vunpack.c.l.b16 %v592
        %v625 = vunpack.c.l.b16 %v593
        %v626 = vunpack.c.l.b16 %v594
        %v627 = vunpack.c.l.b16 %v595
        %v628 = vunpack.c.l.b16 %v596
        %v629 = vunpack.c.l.b16 %v597
        %v630 = vpack.c.b16 %v615, %v614
        %v631 = vpack.c.b16 %v617, %v616
        %v632 = vpack.c.b16 %v619, %v618
        %v633 = vpack.c.b16 %v621, %v620
        %v634 = vpack.c.b16 %v623, %v622
        %v635 = vpack.c.b16 %v625, %v624
        %v636 = vpack.c.b16 %v627, %v626
        %v637 = vpack.c.b16 %v629, %v628
        %646 = vmatprep.subr.bf16.mxu0 0
        %647 = vmatpush1.bf16.msra.mxu0 %v630
        %648 = vmatprep.subr.bf16.mxu0 0
        %649 = vmatpush1.bf16.msra.mxu0 %v631
        %650 = vmatprep.subr.bf16.mxu0 0
        %651 = vmatpush1.bf16.msra.mxu0 %v632
        %652 = vmatprep.subr.bf16.mxu0 0
        %653 = vmatpush1.bf16.msra.mxu0 %v633
        %654 = vmatprep.subr.bf16.mxu0 0
        %655 = vmatpush1.bf16.msra.mxu0 %v634
        %656 = vmatprep.subr.bf16.mxu0 0
        %657 = vmatpush1.bf16.msra.mxu0 %v635
        %658 = vmatprep.subr.bf16.mxu0 0
        %659 = vmatpush1.bf16.msra.mxu0 %v636
        %660 = vmatprep.subr.bf16.mxu0 0
        %661 = vmatpush1.bf16.msra.mxu0 %v637
        %662 = vmatprep.subr.bf16.mxu0 0
        %663 = vmatpush1.bf16.msra.mxu0 0
        %664 = vmatprep.subr.bf16.mxu0 0
        %665 = vmatpush1.bf16.msra.mxu0 0
        %666 = vmatprep.subr.bf16.mxu0 0
        %667 = vmatpush1.bf16.msra.mxu0 0
        %668 = vmatprep.subr.bf16.mxu0 0
        %669 = vmatpush1.bf16.msra.mxu0 0
        %670 = vmatprep.subr.bf16.mxu0 0
        %671 = vmatpush1.bf16.msra.mxu0 0
        %672 = vmatprep.subr.bf16.mxu0 0
        %673 = vmatpush1.bf16.msra.mxu0 0
        %674 = vmatprep.subr.bf16.mxu0 0
        %675 = vmatpush1.bf16.msra.mxu0 0
        %676 = vmatprep.subr.bf16.mxu0 0
        %677 = vmatpush1.bf16.msra.mxu0 0
        %678 = vmatprep.mubr.bf16.mxu0 0
        %679 = vmatmul.mubr.bf16.gmra.mrb[0].mxu0 %v581
        %v680 = vpop.f32.mrb[0].mxu0
        %v681 = vadd.f32 0.0, %v680
        %v682 = vpop.f32.mrb[0].mxu0
        %v683 = vpop.f32.mrb[0].mxu0
        %v684 = vadd.f32 0.0, %v683
        %v685 = vpop.f32.mrb[0].mxu0
        %686 = vdwg.mxu0
        %v689 = vunpack.c.l.b16 %v563
        %v690 = vunpack.c.l.b16 %v564
        %v691 = vpack.c.b16 %v690, %v689
        %v709 = vunpack.c.l.b16 %v565
        %v710 = vunpack.c.l.b16 %v566
        %v711 = vunpack.c.l.b16 %v567
        %v712 = vunpack.c.l.b16 %v568
        %v713 = vunpack.c.l.b16 %v569
        %v714 = vunpack.c.l.b16 %v570
        %v715 = vunpack.c.l.b16 %v571
        %v716 = vunpack.c.l.b16 %v572
        %v717 = vunpack.c.l.b16 %v573
        %v718 = vunpack.c.l.b16 %v574
        %v719 = vunpack.c.l.b16 %v575
        %v720 = vunpack.c.l.b16 %v576
        %v721 = vunpack.c.l.b16 %v577
        %v722 = vunpack.c.l.b16 %v578
        %v723 = vunpack.c.l.b16 %v579
        %v724 = vunpack.c.l.b16 %v580
        %v725 = vpack.c.b16 %v710, %v709
        %v726 = vpack.c.b16 %v712, %v711
        %v727 = vpack.c.b16 %v714, %v713
        %v728 = vpack.c.b16 %v716, %v715
        %v729 = vpack.c.b16 %v718, %v717
        %v730 = vpack.c.b16 %v720, %v719
        %v731 = vpack.c.b16 %v722, %v721
        %v732 = vpack.c.b16 %v724, %v723
        %741 = vmatprep.subr.bf16.mxu0 0
        %742 = vmatpush1.bf16.msra.mxu0 %v725
        %743 = vmatprep.subr.bf16.mxu0 0
        %744 = vmatpush1.bf16.msra.mxu0 %v726
        %745 = vmatprep.subr.bf16.mxu0 0
        %746 = vmatpush1.bf16.msra.mxu0 %v727
        %747 = vmatprep.subr.bf16.mxu0 0
        %748 = vmatpush1.bf16.msra.mxu0 %v728
        %749 = vmatprep.subr.bf16.mxu0 0
        %750 = vmatpush1.bf16.msra.mxu0 %v729
        %751 = vmatprep.subr.bf16.mxu0 0
        %752 = vmatpush1.bf16.msra.mxu0 %v730
        %753 = vmatprep.subr.bf16.mxu0 0
        %754 = vmatpush1.bf16.msra.mxu0 %v731
        %755 = vmatprep.subr.bf16.mxu0 0
        %756 = vmatpush1.bf16.msra.mxu0 %v732
        %757 = vmatprep.subr.bf16.mxu0 0
        %758 = vmatpush1.bf16.msra.mxu0 0
        %759 = vmatprep.subr.bf16.mxu0 0
        %760 = vmatpush1.bf16.msra.mxu0 0
        %761 = vmatprep.subr.bf16.mxu0 0
        %762 = vmatpush1.bf16.msra.mxu0 0
        %763 = vmatprep.subr.bf16.mxu0 0
        %764 = vmatpush1.bf16.msra.mxu0 0
        %765 = vmatprep.subr.bf16.mxu0 0
        %766 = vmatpush1.bf16.msra.mxu0 0
        %767 = vmatprep.subr.bf16.mxu0 0
        %768 = vmatpush1.bf16.msra.mxu0 0
        %769 = vmatprep.subr.bf16.mxu0 0
        %770 = vmatpush1.bf16.msra.mxu0 0
        %771 = vmatprep.subr.bf16.mxu0 0
        %772 = vmatpush1.bf16.msra.mxu0 0
        %773 = vmatprep.mubr.bf16.mxu0 0
        %774 = vmatmul.mubr.bf16.gmra.mrb[0].mxu0 %v691
        %v775 = vpop.f32.mrb[0].mxu0
        %v776 = vadd.f32 %v681, %v775
        %v777 = vpop.f32.mrb[0].mxu0
        %v778 = vpop.f32.mrb[0].mxu0
        %v779 = vadd.f32 %v684, %v778
        %v780 = vpop.f32.mrb[0].mxu0
        %781 = vdwg.mxu0
        %v782 = vld [vmem:[%s5] sm:$0x1]
        %v783 = vld [vmem:[%s5 + $0x1] sm:$0x1]
        %v784 = vld [vmem:[%s5 + $0x2] sm:$0x1]
        %v785 = vld [vmem:[%s5 + $0x3] sm:$0x1]
        %v786 = vlaneseq
        %v787 = vshrl.u32 %v786, 7
        %v788 = vsub.s32 0, %v787
        %v789 = vrot.slane %v785, %v788
        %v790 = vadd.f32 %v776, %v789
        %v791 = vadd.f32 %v779, %v789
        %v792 = vxor.u32 %v790, 2147483648
        %v793 = vxor.u32 %v791, 2147483648
        %v794 = vmul.f32 %v792, 1.442695
        %v795 = vpow.pop %v794
        %v796 = vmul.f32 %v793, 1.442695
        %v797 = vpow.pop %v796
        %v798 = vadd.f32 %v795, 1.0
        %v799 = vadd.f32 %v797, 1.0
        %v800 = vrcp.pop %v798
        %v801 = vmul.f32 1.0, %v800
        %v802 = vrcp.pop %v799
        %v803 = vmul.f32 1.0, %v802
        %v804 = vlaneseq
        %v805 = vshrl.u32 %v804, 7
        %v806 = vsub.s32 0, %v805
        %v807 = vrot.slane %v782, %v806
        %v808 = vadd.f32 %v776, %v807
        %v809 = vadd.f32 %v779, %v807
        %v810 = vlaneseq
        %v811 = vshrl.u32 %v810, 7
        %v812 = vsub.s32 0, %v811
        %v813 = vrot.slane %v783, %v812
        %v814 = vmul.f32 %v801, %v813
        %v815 = vmul.f32 %v803, %v813
        %v816 = vadd.f32 %v808, %v814
        %v817 = vadd.f32 %v809, %v815
        %v818 = vtanh.pop %v816
        %v819 = vtanh.pop %v817
        %v820 = vsub.f32 1.0, %v801
        %v821 = vsub.f32 1.0, %v803
        %v822 = vmul.f32 %v820, %v818
        %v823 = vmul.f32 %v821, %v819
        %v824 = vlaneseq
        %v825 = vshrl.u32 %v824, 7
        %v826 = vsub.s32 0, %v825
        %v827 = vrot.slane %v784, %v826
        %v828 = vmul.f32 %v822, %v827
        %v829 = vmul.f32 %v823, %v827
        %830 = vadd.xlane.f32.xlu0 %v828
        %v831 = vpop.xlane.xlu0 %830
        %832 = vadd.xlane.f32.xlu0 %v829
        %v833 = vpop.xlane.xlu0 %832
        %v834 = vpack.c.bf16 %v562, %v561
        %v835 = vld [vmem:[%s478] sm:$0xf]
        %v836 = vld [vmem:[%s478 + $0x4] sm:$0xf]
        %v837 = vld [vmem:[%s478 + $0x8] sm:$0xf]
        %v838 = vld [vmem:[%s478 + $0xc] sm:$0xf]
        %v839 = vld [vmem:[%s478 + $0x10] sm:$0xf]
        %v840 = vld [vmem:[%s478 + $0x14] sm:$0xf]
        %v841 = vld [vmem:[%s478 + $0x18] sm:$0xf]
        %v842 = vld [vmem:[%s478 + $0x1c] sm:$0xf]
        %v843 = vld [vmem:[%s478 + $0x20] sm:$0xf]
        %v844 = vld [vmem:[%s478 + $0x24] sm:$0xf]
        %v845 = vld [vmem:[%s478 + $0x28] sm:$0xf]
        %v846 = vld [vmem:[%s478 + $0x2c] sm:$0xf]
        %v847 = vld [vmem:[%s478 + $0x30] sm:$0xf]
        %v848 = vld [vmem:[%s478 + $0x34] sm:$0xf]
        %v849 = vld [vmem:[%s478 + $0x38] sm:$0xf]
        %v850 = vld [vmem:[%s478 + $0x3c] sm:$0xf]
        %v851 = vld [vmem:[%s543] sm:$0x1]
        %v852 = vlaneseq
        %v853 = vshrl.u32 %v852, 7
        %v854 = vsub.s32 0, %v853
        %v855 = vrot.slane %v851, %v854
        %v856 = vmul.f32 %v831, %v855
        %v857 = vmul.f32 %v833, %v855
        %v874 = vunpack.c.l.b16 %v835
        %v875 = vunpack.c.l.b16 %v836
        %v876 = vunpack.c.l.b16 %v837
        %v877 = vunpack.c.l.b16 %v838
        %v878 = vunpack.c.l.b16 %v839
        %v879 = vunpack.c.l.b16 %v840
        %v880 = vunpack.c.l.b16 %v841
        %v881 = vunpack.c.l.b16 %v842
        %v882 = vunpack.c.l.b16 %v843
        %v883 = vunpack.c.l.b16 %v844
        %v884 = vunpack.c.l.b16 %v845
        %v885 = vunpack.c.l.b16 %v846
        %v886 = vunpack.c.l.b16 %v847
        %v887 = vunpack.c.l.b16 %v848
        %v888 = vunpack.c.l.b16 %v849
        %v889 = vunpack.c.l.b16 %v850
        %v890 = vpack.c.b16 %v875, %v874
        %v891 = vpack.c.b16 %v877, %v876
        %v892 = vpack.c.b16 %v879, %v878
        %v893 = vpack.c.b16 %v881, %v880
        %v894 = vpack.c.b16 %v883, %v882
        %v895 = vpack.c.b16 %v885, %v884
        %v896 = vpack.c.b16 %v887, %v886
        %v897 = vpack.c.b16 %v889, %v888
        %906 = vmatprep.subr.bf16.mxu0 0
        %907 = vmatpush1.bf16.msra.mxu0 %v890
        %908 = vmatprep.subr.bf16.mxu0 0
        %909 = vmatpush1.bf16.msra.mxu0 %v891
        %910 = vmatprep.subr.bf16.mxu0 0
        %911 = vmatpush1.bf16.msra.mxu0 %v892
        %912 = vmatprep.subr.bf16.mxu0 0
        %913 = vmatpush1.bf16.msra.mxu0 %v893
        %914 = vmatprep.subr.bf16.mxu0 0
        %915 = vmatpush1.bf16.msra.mxu0 %v894
        %916 = vmatprep.subr.bf16.mxu0 0
        %917 = vmatpush1.bf16.msra.mxu0 %v895
        %918 = vmatprep.subr.bf16.mxu0 0
        %919 = vmatpush1.bf16.msra.mxu0 %v896
        %920 = vmatprep.subr.bf16.mxu0 0
        %921 = vmatpush1.bf16.msra.mxu0 %v897
        %922 = vmatprep.subr.bf16.mxu0 0
        %923 = vmatpush1.bf16.msra.mxu0 0
        %924 = vmatprep.subr.bf16.mxu0 0
        %925 = vmatpush1.bf16.msra.mxu0 0
        %926 = vmatprep.subr.bf16.mxu0 0
        %927 = vmatpush1.bf16.msra.mxu0 0
        %928 = vmatprep.subr.bf16.mxu0 0
        %929 = vmatpush1.bf16.msra.mxu0 0
        %930 = vmatprep.subr.bf16.mxu0 0
        %931 = vmatpush1.bf16.msra.mxu0 0
        %932 = vmatprep.subr.bf16.mxu0 0
        %933 = vmatpush1.bf16.msra.mxu0 0
        %934 = vmatprep.subr.bf16.mxu0 0
        %935 = vmatpush1.bf16.msra.mxu0 0
        %936 = vmatprep.subr.bf16.mxu0 0
        %937 = vmatpush1.bf16.msra.mxu0 0
        %938 = vmatprep.mubr.bf16.mxu0 0
        %939 = vmatmul.mubr.bf16.gmra.mrb[0].mxu0 %v834
        %v940 = vpop.f32.mrb[0].mxu0
        %v941 = vadd.f32 %v856, %v940
        %v942 = vpop.f32.mrb[0].mxu0
        %v943 = vpop.f32.mrb[0].mxu0
        %v944 = vadd.f32 %v857, %v943
        %v945 = vpop.f32.mrb[0].mxu0
        %946 = vdwg.mxu0
        %v947 = vld [vmem:[%s543 + $0x1] sm:$0x1]
        %v948 = vlaneseq
        %v949 = vshrl.u32 %v948, 7
        %v950 = vsub.s32 0, %v949
        %v951 = vrot.slane %v947, %v950
        %v952 = vadd.f32 %v941, %v951
        %v953 = vadd.f32 %v944, %v951
        %954 = vst [vmem:[%s529] sm:$0xff] %v822
        %955 = vst [vmem:[%s529 + $0x8] sm:$0xff] %v823
        %956 = vst [vmem:[%s536] sm:$0xff] %v952
        %957 = vst [vmem:[%s536 + $0x8] sm:$0xff] %v953
        %s958 = sand.u32 %s252, 1
        %s959 = scalar_lea.sflag [#allocation4], %s958
        %s960 = sand.u32 %s252, 1
        %s961 = smul.addr %s960, 16
        %s962 = scalar_lea.vmem [#allocation13], %s961
        %s963 = sand.u32 %s278, 1
        %s964 = scalar_lea.sflag [#allocation15], %s963
        %s965 = sand.u32 %s278, 1
        %s966 = smul.addr %s965, 16
        %s967 = scalar_lea.vmem [#allocation14], %s966
        // Predicated region
        $region81: #{tpu_custom_call.1} parent=51 // pred_check
          %p968 = pneg %p262
        $region82: #{tpu_custom_call.1} parent=51 // pred_check_branch
          %970 = sbr.rel (%p968) target = $region84
        $region83: #{tpu_custom_call.1} parent=51 // pred_region
          %s971 = smul.u32 2, %s41
          %s973 = ssub.s32 256, 256
          %974 = vsyncadd %s959, %s973
          %s975 = smul.addr %s971, 128
          %s976 = scalar_lea.hbm %s8, %s975
          %s977 = sshll.u32 %s962, 4
          %s978 = int_to_ptr.vmem [resolvable:$true] %s977
          %983 = dma.vmem_to_hbm [thread:$0]  %s978, 256, %s976, %s959, 128, 128, 8
        $region84: #{tpu_custom_call.1} parent=51 // pred_fallthru
          _
        // Predicated region
        $region85: #{tpu_custom_call.1} parent=51 // pred_check
          %p984 = pneg %p288
        $region86: #{tpu_custom_call.1} parent=51 // pred_check_branch
          %986 = sbr.rel (%p984) target = $region88
        $region87: #{tpu_custom_call.1} parent=51 // pred_region
          %s987 = smul.u32 2, %s41
          %s989 = ssub.s32 256, 256
          %990 = vsyncadd %s964, %s989
          %s991 = smul.addr %s987, 128
          %s992 = scalar_lea.hbm %s9, %s991
          %s993 = sshll.u32 %s967, 4
          %s994 = int_to_ptr.vmem [resolvable:$true] %s993
          %999 = dma.vmem_to_hbm [thread:$0]  %s994, 256, %s992, %s964, 128, 128, 8
        $region88: #{tpu_custom_call.1} parent=51 // pred_fallthru
          _
      $region52: #{tpu_custom_call.1} parent=5 // pred_fallthru
        _
      %p1000 = scmp.le.s32.totalorder 2, %s32
      // Predicated region
      $region89: #{tpu_custom_call.1} parent=5 // pred_check
        %p1001 = pneg %p1000
      $region90: #{tpu_custom_call.1} parent=5 // pred_check_branch
        %1003 = sbr.rel (%p1001) target = $region92
      $region91: #{tpu_custom_call.1} parent=5 // pred_region
        %s1004 = ssub.s32 %s32, 2
        // Predicated region
        $region93: #{tpu_custom_call.1} parent=91 // pred_check
          %p1005 = pneg %p268
        $region94: #{tpu_custom_call.1} parent=91 // pred_check_branch
          %1007 = sbr.rel (%p1005) target = $region96
        $region95: #{tpu_custom_call.1} parent=91 // pred_region
          %s1008 = sand.u32 %s253, 1
          %s1009 = scalar_lea.sflag [#allocation4], %s1008
          %s1010 = sand.u32 %s253, 1
          %s1011 = smul.addr %s1010, 16
          %s1012 = scalar_lea.vmem [#allocation13], %s1011
          %1013 = dma.done %s1009, 256
        $region96: #{tpu_custom_call.1} parent=91 // pred_fallthru
          _
        // Predicated region
        $region97: #{tpu_custom_call.1} parent=91 // pred_check
          %p1014 = pneg %p294
        $region98: #{tpu_custom_call.1} parent=91 // pred_check_branch
          %1016 = sbr.rel (%p1014) target = $region100
        $region99: #{tpu_custom_call.1} parent=91 // pred_region
          %s1017 = sand.u32 %s279, 1
          %s1018 = scalar_lea.sflag [#allocation15], %s1017
          %s1019 = sand.u32 %s279, 1
          %s1020 = smul.addr %s1019, 16
          %s1021 = scalar_lea.vmem [#allocation14], %s1020
          %1022 = dma.done %s1018, 256
        $region100: #{tpu_custom_call.1} parent=91 // pred_fallthru
          _
      $region92: #{tpu_custom_call.1} parent=5 // pred_fallthru
        _
    $region6: #{tpu_custom_call.1} parent=1 // loop_footer
      %s36 = sadd.s32 1, %s32
    $region7: #{tpu_custom_call.1} parent=1 // loop_footer_branch
      %31 = sbr.rel target = $region3
    $region8: #{tpu_custom_call.1} parent=1 // loop_exit
      _
    %1023 = vsyncpa [#allocation3], 1
    %s1024 = scalar_lea.sflag [#allocation3], 1
    %1025 = vsyncpa %s1024, 1
    %1026 = vsyncpa [#allocation6], 1
    %s1027 = scalar_lea.sflag [#allocation6], 1
    %1028 = vsyncpa %s1027, 1
    %1029 = vsyncpa [#allocation9], 1
    %1030 = vsyncpa [#allocation12], 1
    %s1031 = scalar_lea.sflag [#allocation12], 1
    %1032 = vsyncpa %s1031, 1
    %1033 = vsyncpa [#allocation4], 1
    %s1034 = scalar_lea.sflag [#allocation4], 1
    %1035 = vsyncpa %s1034, 1
    %1036 = vsyncpa [#allocation15], 1
    %s1037 = scalar_lea.sflag [#allocation15], 1
    %1038 = vsyncpa %s1037, 1

</llo_original>
